<compile_context>
chip_gen: v7x
topology: tpu7x:2x2x1
jax: 0.10.0
libtpu: 0.0.40
codegen_flags: <defaults>
</compile_context>

<pallas_src>
import math
from functools import partial, reduce

import jax
import jax.numpy as jnp
from jax.experimental import pallas as pl
from jax.experimental.pallas import tpu as pltpu  # noqa: F401  (kept for optional CompilerParams)


def _sigmoid(x):
  # exact sigmoid via tanh -> routed to the EUP (transcendental) slot.
  return 0.5 * (jnp.tanh(0.5 * x) + 1.0)


# ----------------------------------------------------------------------------
# Fused kernel: encoder + classifier + reparam + decoder + output softmax
# ----------------------------------------------------------------------------
def _fused_m2_kernel(
    slab_ref,                      # (N, LA + nf + lat)  [x_perm_rep | y | eps]
    w1_ref,                        # (LA + nf + lat, enc_h1 + h1_clas + dec_h1)
    w2_ref,                        # (enc_h1 + h1_clas, enc_h2 + h2_clas)  block-diag
    w3_ref,                        # (enc_h2 + h2_clas, 2*lat + nf)        block-diag
    dw1z_ref,                      # (lat, dec_h1)
    dw2_ref,                       # (dec_h1, dec_h2)
    dwout_ref,                     # (dec_h2, LA)  dictionary weight, permuted + scaled
    bias_ref,                      # (1, (enc_h2+h2_clas) + (2*lat+nf) + dec_h2 + LA)
    main_ref,                      # out: (N, 2*lat + LA + 1)  [mu | logsigma | px | logpx]
    cls_ref,                       # out: (B, 2*nf)            [q | logq]
    *, B, L, A, lat, nf, enc_h1, enc_h2, dec_h1, dec_h2, h1_clas, h2_clas):
  f32 = jnp.float32
  dot = partial(jnp.dot, preferred_element_type=f32)
  LA = L * A
  Hec = enc_h1 + h1_clas           # width of the relu'd (encoder|classifier) part of r1
  o2 = enc_h2 + h2_clas
  o3 = 2 * lat + nf

  s = slab_ref[...]                                     # (N, LA + nf + lat)
  bias = bias_ref[...]
  b2 = bias[:, 0:o2]
  b3 = bias[:, o2:o2 + o3]
  db2 = bias[:, o2 + o3:o2 + o3 + dec_h2]
  db3 = bias[:, o2 + o3 + dec_h2:o2 + o3 + dec_h2 + LA]

  # --- fused layer 1: encoder-x + classifier + decoder-(y,bias), ONE matmul ---
  r1 = dot(s, w1_ref[...])                              # (N, enc_h1 + h1_clas + dec_h1)
  a1 = jnp.maximum(r1[:, :Hec], 0.0)                    # relu(enc L1 | cls L1)
  dec_y1 = r1[:, Hec:]                                  # decoder y-contribution + dec_b1

  # --- fused layer 2 / head (block-diagonal encoder|classifier weights) ---
  a2 = jnp.maximum(dot(a1, w2_ref[...]) + b2, 0.0)      # (N, enc_h2 + h2_clas)
  r3 = dot(a2, w3_ref[...]) + b3                        # (N, 2*lat + nf) = [mu|logsigma|logits]
  mu = r3[:, :lat]
  ls = r3[:, lat:2 * lat]

  # --- classifier softmax / log_softmax (only the first B rows are real x rows) ---
  logits = r3[:B, 2 * lat:2 * lat + nf]
  cm = jnp.max(logits, axis=-1, keepdims=True)
  cs = logits - cm
  ce = jnp.exp(cs)
  cden = jnp.sum(ce, axis=-1, keepdims=True)
  q = ce * pl.reciprocal(cden, approx=True)
  logq = cs - jnp.log(cden)
  cls_ref[...] = jnp.concatenate([q, logq], axis=-1)    # (B, 2*nf)

  # --- reparameterized sample z = mu + exp(logsigma) * eps (eps precomputed) ---
  eps = s[:, LA + nf:LA + nf + lat]
  z = mu + jnp.exp(ls) * eps

  # --- decoder ---
  d1 = jnp.maximum(dot(z, dw1z_ref[...]) + dec_y1, 0.0)
  d2 = _sigmoid(dot(d1, dw2_ref[...]) + db2)
  h3 = dot(d2, dwout_ref[...]) + db3                    # (N, LA) alphabet-major order

  # --- exact per-position softmax in the permuted (alphabet-major) layout ---
  # column a*L + l; one position's alphabet group = column l of each of the A
  # contiguous L-wide lane slices -> per-group max/sum are elementwise trees.
  parts = [h3[:, a * L:(a + 1) * L] for a in range(A)]
  mg = reduce(jnp.maximum, parts)                       # (N, L) per-position max (exact)
  diffs = [p - mg for p in parts]
  eparts = [jnp.exp(d) for d in diffs]
  den = reduce(jnp.add, eparts)                         # (N, L) per-position sums
  inv = pl.reciprocal(den, approx=True)
  logden = jnp.log(den)
  px = jnp.concatenate([ep * inv for ep in eparts], axis=-1)     # (N, LA) permuted
  logpx = reduce(jnp.add, [
      jnp.sum(s[:, a * L:(a + 1) * L] * (diffs[a] - logden),
              axis=-1, keepdims=True)
      for a in range(A)])                               # (N, 1)

  # --- single lane-dense output slab [mu | logsigma | px | logpx] ---
  main_ref[...] = jnp.concatenate([r3[:, :2 * lat], px, logpx], axis=-1)


# ----------------------------------------------------------------------------
# Parameter init (deterministic, mirrors the torch __init__ shapes/intent)
# ----------------------------------------------------------------------------
def _xavier(key, shape, fan_in, fan_out):
  std = math.sqrt(2.0 / (fan_in + fan_out))
  return std * jax.random.normal(key, shape, jnp.float32)


def init_params(key, cfg):
  L, A = cfg["L"], cfg["A"]
  LA = L * A
  lat = cfg["latent_dim"]
  nf, nd = cfg["nb_features"], cfg["nb_diseases"]
  enc_in = LA + nd * nf
  dec_in = lat + nd * nf
  ks = jax.random.split(key, 16)
  p = {}
  # Encoder (weights stored transposed: (in, out))
  p["enc_w1"] = _xavier(ks[0], (enc_in, cfg["enc_h1"]), enc_in, cfg["enc_h1"])
  p["enc_b1"] = jnp.full((1, cfg["enc_h1"]), 0.1, jnp.float32)
  p["enc_w2"] = _xavier(ks[1], (cfg["enc_h1"], cfg["enc_h2"]), cfg["enc_h1"], cfg["enc_h2"])
  p["enc_b2"] = jnp.full((1, cfg["enc_h2"]), 0.1, jnp.float32)
  p["enc_wmu"] = _xavier(ks[2], (cfg["enc_h2"], lat), cfg["enc_h2"], lat)
  p["enc_bmu"] = jnp.full((1, lat), 0.1, jnp.float32)
  p["enc_wls"] = _xavier(ks[3], (cfg["enc_h2"], lat), cfg["enc_h2"], lat)
  p["enc_bls"] = jnp.full((1, lat), -5.0, jnp.float32)
  # Classifier
  p["cls_w1"] = _xavier(ks[4], (LA, cfg["h1_clas"]), LA, cfg["h1_clas"])
  p["cls_b1"] = jnp.zeros((1, cfg["h1_clas"]), jnp.float32)
  p["cls_w2"] = _xavier(ks[5], (cfg["h1_clas"], cfg["h2_clas"]), cfg["h1_clas"], cfg["h2_clas"])
  p["cls_b2"] = jnp.zeros((1, cfg["h2_clas"]), jnp.float32)
  p["cls_w3"] = _xavier(ks[6], (cfg["h2_clas"], nf), cfg["h2_clas"], nf)
  p["cls_b3"] = jnp.zeros((1, nf), jnp.float32)
  # Deterministic sparse decoder
  p["dec_w1"] = _xavier(ks[7], (dec_in, cfg["dec_h1"]), dec_in, cfg["dec_h1"])
  p["dec_b1"] = jnp.full((1, cfg["dec_h1"]), 0.1, jnp.float32)
  p["dec_w2"] = _xavier(ks[8], (cfg["dec_h1"], cfg["dec_h2"]), cfg["dec_h1"], cfg["dec_h2"])
  p["dec_b2"] = jnp.full((1, cfg["dec_h2"]), 0.1, jnp.float32)
  p["dec_w3"] = _xavier(ks[9], (cfg["dec_h2"], L * cfg["cw"]),
                        cfg["dec_h2"], L * cfg["cw"])
  p["dec_b3"] = jnp.full((1, LA), 0.1, jnp.float32)
  # TODO(synk): original __init__ calls nn.init.zeros_(self.mu_S)/ones_(self.mu_l),
  # attributes that don't exist on DeterministicSparseDecoder; we implement the
  # evident intent (S = 0, l = 1).
  p["dec_S"] = jnp.zeros((cfg["dec_h2"] // cfg["nb_patterns"], L), jnp.float32)
  p["dec_C"] = _xavier(ks[10], (cfg["cw"], A), cfg["cw"], A)
  p["dec_l"] = jnp.ones((1, 1), jnp.float32)
  return p


# ----------------------------------------------------------------------------
# One-time parameter prep: pack/permute/fold everything parameter-only.
# ----------------------------------------------------------------------------
def prepare_fused_params(params, cfg):
  L, A = cfg["L"], cfg["A"]
  LA = L * A
  lat, nf = cfg["latent_dim"], cfg["nb_features"]
  eh1, eh2 = cfg["enc_h1"], cfg["enc_h2"]
  dh1, dh2 = cfg["dec_h1"], cfg["dec_h2"]
  c1, c2 = cfg["h1_clas"], cfg["h2_clas"]
  f32 = jnp.float32
  # TODO(synk): label/weight mapping for nb_diseases > 1 not implemented.
  assert cfg["nb_diseases"] == 1

  # original (l, a) flat index for each alphabet-major (a, l) column/row
  j = jnp.arange(LA)
  perm = (j % L) * A + (j // L)

  # Dictionary output weight W_out = sigmoid(S) * (W3.view @ C), scaled by the
  # temperature softplus(l), columns permuted to alphabet-major order.
  S = jax.nn.sigmoid(jnp.tile(params["dec_S"], (cfg["nb_patterns"], 1)))   # (dec_h2, L)
  W3v = params["dec_w3"].reshape(dh2 * L, cfg["cw"])
  W_out = jnp.dot(W3v, params["dec_C"]).reshape(dh2, L, A)
  W_out = (W_out * S[:, :, None]).reshape(dh2, LA)
  lsoft = jax.nn.softplus(params["dec_l"])
  dec_wout = (W_out * lsoft)[:, perm].astype(f32)
  dec_b3 = (params["dec_b3"] * lsoft)[:, perm].astype(f32)

  # Fused layer-1 weight: rows [x_perm (LA) | y (nf) | eps (lat)],
  # cols [enc_h1 | h1_clas | dec_h1].  Since y is one-hot, adding the biases to
  # the y rows folds enc_b1 / cls_b1 / dec_b1 into the matmul.  eps rows = 0.
  enc_w1x = params["enc_w1"][:LA][perm]        # row-permuted to alphabet-major input
  enc_w1y = params["enc_w1"][LA:]
  cls_w1 = params["cls_w1"][perm]
  dec_w1z = params["dec_w1"][:lat]
  dec_w1y = params["dec_w1"][lat:]
  w1 = jnp.zeros((LA + nf + lat, eh1 + c1 + dh1), f32)
  w1 = w1.at[:LA, :eh1].set(enc_w1x)
  w1 = w1.at[:LA, eh1:eh1 + c1].set(cls_w1)
  w1 = w1.at[LA:LA + nf, :eh1].set(enc_w1y + params["enc_b1"])
  w1 = w1.at[LA:LA + nf, eh1:eh1 + c1].set(jnp.tile(params["cls_b1"], (nf, 1)))
  w1 = w1.at[LA:LA + nf, eh1 + c1:].set(dec_w1y + params["dec_b1"])

  # Block-diagonal layer-2 / head weights (encoder | classifier).
  w2 = jnp.zeros((eh1 + c1, eh2 + c2), f32)
  w2 = w2.at[:eh1, :eh2].set(params["enc_w2"])
  w2 = w2.at[eh1:, eh2:].set(params["cls_w2"])
  w3 = jnp.zeros((eh2 + c2, 2 * lat + nf), f32)
  w3 = w3.at[:eh2, :lat].set(params["enc_wmu"])
  w3 = w3.at[:eh2, lat:2 * lat].set(params["enc_wls"])
  w3 = w3.at[eh2:, 2 * lat:].set(params["cls_w3"])

  # Single bias row: [enc_b2|cls_b2 | enc_bmu|enc_bls|cls_b3 | dec_b2 | dec_b3_perm].
  bias = jnp.concatenate([
      params["enc_b2"], params["cls_b2"],
      params["enc_bmu"], params["enc_bls"], params["cls_b3"],
      params["dec_b2"],
      dec_b3,
  ], axis=1).astype(f32)

  return dict(w1=w1, w2=w2, w3=w3,
              dw1z=dec_w1z.astype(f32), dw2=params["dec_w2"].astype(f32),
              dwout=dec_wout, bias=bias)


# ----------------------------------------------------------------------------
# Forward
# ----------------------------------------------------------------------------
def create_labels(batch, nb_features):
  # M2 unlabelled enumeration: rows [c*B:(c+1)*B] are one-hot class c, matching
  # the x_flat.repeat(nb_features, 1) row ordering.
  return jnp.repeat(jnp.eye(nb_features, dtype=jnp.float32), batch, axis=0)


def m2_vae_forward(fused, x, eps_key, cfg):
  B = x.shape[0]
  L, A = cfg["L"], cfg["A"]
  LA = L * A
  nf, lat = cfg["nb_features"], cfg["latent_dim"]
  N = B * nf
  f32 = jnp.float32

  # Alphabet-major flattening of x (matches the permuted layer-1 weight rows and
  # the permuted decoder output columns), repeated for the nf class hypotheses.
  x_perm = jnp.transpose(x.astype(f32), (0, 2, 1)).reshape(B, LA)
  x_perm_rep = jnp.tile(x_perm, (nf, 1))
  y = create_labels(B, nf)
  eps = jax.random.normal(eps_key, (N, lat), f32)       # RNG stays in plain JAX
  slab = jnp.concatenate([x_perm_rep, y, eps], axis=1)  # (N, LA + nf + lat)

  kernel = partial(_fused_m2_kernel, B=B, L=L, A=A, lat=lat, nf=nf,
                   enc_h1=cfg["enc_h1"], enc_h2=cfg["enc_h2"],
                   dec_h1=cfg["dec_h1"], dec_h2=cfg["dec_h2"],
                   h1_clas=cfg["h1_clas"], h2_clas=cfg["h2_clas"])
  out_shape = (
      jax.ShapeDtypeStruct((N, 2 * lat + LA + 1), f32),  # [mu | logsigma | px | logpx]
      jax.ShapeDtypeStruct((B, 2 * nf), f32),            # [qy_x | logqy_x]
  )
  # TODO(synk): for non-toy N, add a row-block grid over N with
  # dimension_semantics=("parallel",) so v7x's two TensorCores split the batch;
  # at these sizes a grid-less single call is fastest on single-TC v5e/v6e.
  main, clsout = pl.pallas_call(
      kernel,
      out_shape=out_shape,
  )(slab, fused["w1"], fused["w2"], fused["w3"],
    fused["dw1z"], fused["dw2"], fused["dwout"], fused["bias"])

  mu = main[:, :lat]
  logsigma = main[:, lat:2 * lat]
  px_perm = main[:, 2 * lat:2 * lat + LA]
  logpx_zy = main[:, 2 * lat + LA]
  px_zy = px_perm.reshape(N, A, L).transpose(0, 2, 1)   # back to (N, L, A)
  qy_x = clsout[:, :nf]
  logqy_x = clsout[:, nf:]
  return mu, logsigma, px_zy, logpx_zy, qy_x, logqy_x, y


# ----------------------------------------------------------------------------
if __name__ == "__main__":
  cfg = dict(
      latent_dim=5, L=8, A=4,
      enc_h1=16, enc_h2=12,
      dec_h1=16, dec_h2=12,
      nb_diseases=1, nb_features=3,
      h1_clas=10, h2_clas=8,
      cw=6, nb_patterns=4,
  )
  B = 8   # multiple of 8 keeps the per-class row blocks sublane-aligned

  key = jax.random.PRNGKey(0)
  k_x, k_eps, k_p = jax.random.split(key, 3)
  # one-hot sequence data, shape (B, L, A)
  x = jax.nn.one_hot(
      jax.random.randint(k_x, (B, cfg["L"]), 0, cfg["A"]),
      cfg["A"], dtype=jnp.float32)

  params = init_params(k_p, cfg)
  fused = prepare_fused_params(params, cfg)   # hoisted: parameter-only work
  outs = m2_vae_forward(fused, x, k_eps, cfg)
  jax.block_until_ready(outs)

  mu, logsigma, px_zy, logpx_zy, qy_x, logqy_x, y = outs
  N = B * cfg["nb_features"]
  assert mu.shape == (N, cfg["latent_dim"])
  assert logsigma.shape == (N, cfg["latent_dim"])
  assert px_zy.shape == (N, cfg["L"], cfg["A"])
  assert logpx_zy.shape == (N,)
  assert qy_x.shape == (B, cfg["nb_features"])
  assert logqy_x.shape == (B, cfg["nb_features"])
  assert y.shape == (N, cfg["nb_features"])
  for a in (mu, logsigma, px_zy, logpx_zy, qy_x, logqy_x):
    assert bool(jnp.all(jnp.isfinite(a)))
  print("KERNEL_OK")
</pallas_src>

<mosaic_0001>
module attributes {stable_mosaic.version = 11 : i64} {
  func.func @_fused_m2_kernel(%arg0: memref<24x40xf32, #tpu.memory_space<vmem>>, %arg1: memref<40x42xf32, #tpu.memory_space<vmem>>, %arg2: memref<26x20xf32, #tpu.memory_space<vmem>>, %arg3: memref<20x13xf32, #tpu.memory_space<vmem>>, %arg4: memref<5x16xf32, #tpu.memory_space<vmem>>, %arg5: memref<16x12xf32, #tpu.memory_space<vmem>>, %arg6: memref<12x32xf32, #tpu.memory_space<vmem>>, %arg7: memref<1x77xf32, #tpu.memory_space<vmem>>, %arg8: memref<24x43xf32, #tpu.memory_space<vmem>>, %arg9: memref<8x6xf32, #tpu.memory_space<vmem>>) attributes {dimension_semantics = [], scalar_prefetch = 0 : i64, scratch_operands = 0 : i64, tpu.core_type = #tpu.core_type<tc>} {
    %c0 = arith.constant 0 : index
    %c0_0 = arith.constant 0 : index
    %0 = vector.load %arg0[%c0, %c0_0] : memref<24x40xf32, #tpu.memory_space<vmem>>, vector<24x40xf32>
    %c0_1 = arith.constant 0 : index
    %c0_2 = arith.constant 0 : index
    %1 = vector.load %arg7[%c0_1, %c0_2] : memref<1x77xf32, #tpu.memory_space<vmem>>, vector<1x77xf32>
    %2 = vector.extract_strided_slice %1 {offsets = [0, 0], sizes = [1, 20], strides = [1, 1]} : vector<1x77xf32> to vector<1x20xf32>
    %3 = vector.extract_strided_slice %1 {offsets = [0, 20], sizes = [1, 13], strides = [1, 1]} : vector<1x77xf32> to vector<1x13xf32>
    %4 = vector.extract_strided_slice %1 {offsets = [0, 33], sizes = [1, 12], strides = [1, 1]} : vector<1x77xf32> to vector<1x12xf32>
    %5 = vector.extract_strided_slice %1 {offsets = [0, 45], sizes = [1, 32], strides = [1, 1]} : vector<1x77xf32> to vector<1x32xf32>
    %c0_3 = arith.constant 0 : index
    %c0_4 = arith.constant 0 : index
    %6 = vector.load %arg1[%c0_3, %c0_4] : memref<40x42xf32, #tpu.memory_space<vmem>>, vector<40x42xf32>
    %cst = arith.constant dense<0.000000e+00> : vector<24x42xf32>
    %7 = tpu.matmul %0, %6, %cst {dimension_numbers = #tpu.dot_dimension_numbers<[1], [0], [0], [1], [0, 0, 1, 1], [], []>} : vector<24x40xf32>, vector<40x42xf32>, vector<24x42xf32> -> vector<24x42xf32>
    %8 = vector.extract_strided_slice %7 {offsets = [0, 0], sizes = [24, 26], strides = [1, 1]} : vector<24x42xf32> to vector<24x26xf32>
    %cst_5 = arith.constant 0.000000e+00 : f32
    %9 = vector.broadcast %cst_5 : f32 to vector<24x26xf32>
    %10 = arith.maximumf %8, %9 : vector<24x26xf32>
    %11 = vector.extract_strided_slice %7 {offsets = [0, 26], sizes = [24, 16], strides = [1, 1]} : vector<24x42xf32> to vector<24x16xf32>
    %c0_6 = arith.constant 0 : index
    %c0_7 = arith.constant 0 : index
    %12 = vector.load %arg2[%c0_6, %c0_7] : memref<26x20xf32, #tpu.memory_space<vmem>>, vector<26x20xf32>
    %cst_8 = arith.constant dense<0.000000e+00> : vector<24x20xf32>
    %13 = tpu.matmul %10, %12, %cst_8 {dimension_numbers = #tpu.dot_dimension_numbers<[1], [0], [0], [1], [0, 0, 1, 1], [], []>} : vector<24x26xf32>, vector<26x20xf32>, vector<24x20xf32> -> vector<24x20xf32>
    %14 = vector.broadcast %2 : vector<1x20xf32> to vector<24x20xf32>
    %15 = arith.addf %13, %14 : vector<24x20xf32>
    %cst_9 = arith.constant 0.000000e+00 : f32
    %16 = vector.broadcast %cst_9 : f32 to vector<24x20xf32>
    %17 = arith.maximumf %15, %16 : vector<24x20xf32>
    %c0_10 = arith.constant 0 : index
    %c0_11 = arith.constant 0 : index
    %18 = vector.load %arg3[%c0_10, %c0_11] : memref<20x13xf32, #tpu.memory_space<vmem>>, vector<20x13xf32>
    %cst_12 = arith.constant dense<0.000000e+00> : vector<24x13xf32>
    %19 = tpu.matmul %17, %18, %cst_12 {dimension_numbers = #tpu.dot_dimension_numbers<[1], [0], [0], [1], [0, 0, 1, 1], [], []>} : vector<24x20xf32>, vector<20x13xf32>, vector<24x13xf32> -> vector<24x13xf32>
    %20 = vector.broadcast %3 : vector<1x13xf32> to vector<24x13xf32>
    %21 = arith.addf %19, %20 : vector<24x13xf32>
    %22 = vector.extract_strided_slice %21 {offsets = [0, 0], sizes = [24, 5], strides = [1, 1]} : vector<24x13xf32> to vector<24x5xf32>
    %23 = vector.extract_strided_slice %21 {offsets = [0, 5], sizes = [24, 5], strides = [1, 1]} : vector<24x13xf32> to vector<24x5xf32>
    %24 = vector.extract_strided_slice %21 {offsets = [0, 10], sizes = [8, 3], strides = [1, 1]} : vector<24x13xf32> to vector<8x3xf32>
    %cst_13 = arith.constant dense<0xFF800000> : vector<8xf32>
    %25 = vector.multi_reduction <maximumf>, %24, %cst_13 [1] : vector<8x3xf32> to vector<8xf32>
    %26 = vector.shape_cast %25 : vector<8xf32> to vector<8x1xf32>
    %27 = vector.broadcast %26 : vector<8x1xf32> to vector<8x3xf32>
    %28 = arith.subf %24, %27 : vector<8x3xf32>
    %29 = math.exp %28 : vector<8x3xf32>
    %cst_14 = arith.constant dense<0.000000e+00> : vector<8xf32>
    %30 = vector.multi_reduction <add>, %29, %cst_14 [1] : vector<8x3xf32> to vector<8xf32>
    %31 = vector.shape_cast %30 : vector<8xf32> to vector<8x1xf32>
    %32 = tpu.reciprocal %31 {approx = true} : vector<8x1xf32> -> vector<8x1xf32>
    %33 = vector.broadcast %32 : vector<8x1xf32> to vector<8x3xf32>
    %34 = arith.mulf %29, %33 : vector<8x3xf32>
    %35 = math.log %31 : vector<8x1xf32>
    %36 = vector.broadcast %35 : vector<8x1xf32> to vector<8x3xf32>
    %37 = arith.subf %28, %36 : vector<8x3xf32>
    %38 = tpu.concatenate %34, %37 in 1 : vector<8x3xf32>, vector<8x3xf32> -> vector<8x6xf32>
    %c0_15 = arith.constant 0 : index
    %c0_16 = arith.constant 0 : index
    %39 = vector.load %arg9[%c0_15, %c0_16] : memref<8x6xf32, #tpu.memory_space<vmem>>, vector<8x6xf32>
    tpu.vector_store %arg9[%c0_15, %c0_16], %38 {strides = array<i32>} : memref<8x6xf32, #tpu.memory_space<vmem>>, vector<8x6xf32>,
    %40 = vector.extract_strided_slice %0 {offsets = [0, 35], sizes = [24, 5], strides = [1, 1]} : vector<24x40xf32> to vector<24x5xf32>
    %41 = math.exp %23 : vector<24x5xf32>
    %42 = arith.mulf %41, %40 : vector<24x5xf32>
    %43 = arith.addf %22, %42 : vector<24x5xf32>
    %c0_17 = arith.constant 0 : index
    %c0_18 = arith.constant 0 : index
    %44 = vector.load %arg4[%c0_17, %c0_18] : memref<5x16xf32, #tpu.memory_space<vmem>>, vector<5x16xf32>
    %cst_19 = arith.constant dense<0.000000e+00> : vector<24x16xf32>
    %45 = tpu.matmul %43, %44, %cst_19 {dimension_numbers = #tpu.dot_dimension_numbers<[1], [0], [0], [1], [0, 0, 1, 1], [], []>} : vector<24x5xf32>, vector<5x16xf32>, vector<24x16xf32> -> vector<24x16xf32>
    %46 = arith.addf %45, %11 : vector<24x16xf32>
    %cst_20 = arith.constant 0.000000e+00 : f32
    %47 = vector.broadcast %cst_20 : f32 to vector<24x16xf32>
    %48 = arith.maximumf %46, %47 : vector<24x16xf32>
    %c0_21 = arith.constant 0 : index
    %c0_22 = arith.constant 0 : index
    %49 = vector.load %arg5[%c0_21, %c0_22] : memref<16x12xf32, #tpu.memory_space<vmem>>, vector<16x12xf32>
    %cst_23 = arith.constant dense<0.000000e+00> : vector<24x12xf32>
    %50 = tpu.matmul %48, %49, %cst_23 {dimension_numbers = #tpu.dot_dimension_numbers<[1], [0], [0], [1], [0, 0, 1, 1], [], []>} : vector<24x16xf32>, vector<16x12xf32>, vector<24x12xf32> -> vector<24x12xf32>
    %51 = vector.broadcast %4 : vector<1x12xf32> to vector<24x12xf32>
    %52 = arith.addf %50, %51 : vector<24x12xf32>
    %cst_24 = arith.constant 5.000000e-01 : f32
    %53 = vector.broadcast %cst_24 : f32 to vector<24x12xf32>
    %54 = arith.mulf %53, %52 : vector<24x12xf32>
    %55 = math.tanh %54 : vector<24x12xf32>
    %cst_25 = arith.constant 1.000000e+00 : f32
    %56 = vector.broadcast %cst_25 : f32 to vector<24x12xf32>
    %57 = arith.addf %55, %56 : vector<24x12xf32>
    %cst_26 = arith.constant 5.000000e-01 : f32
    %58 = vector.broadcast %cst_26 : f32 to vector<24x12xf32>
    %59 = arith.mulf %58, %57 : vector<24x12xf32>
    %c0_27 = arith.constant 0 : index
    %c0_28 = arith.constant 0 : index
    %60 = vector.load %arg6[%c0_27, %c0_28] : memref<12x32xf32, #tpu.memory_space<vmem>>, vector<12x32xf32>
    %cst_29 = arith.constant dense<0.000000e+00> : vector<24x32xf32>
    %61 = tpu.matmul %59, %60, %cst_29 {dimension_numbers = #tpu.dot_dimension_numbers<[1], [0], [0], [1], [0, 0, 1, 1], [], []>} : vector<24x12xf32>, vector<12x32xf32>, vector<24x32xf32> -> vector<24x32xf32>
    %62 = vector.broadcast %5 : vector<1x32xf32> to vector<24x32xf32>
    %63 = arith.addf %61, %62 : vector<24x32xf32>
    %64 = vector.extract_strided_slice %63 {offsets = [0, 0], sizes = [24, 8], strides = [1, 1]} : vector<24x32xf32> to vector<24x8xf32>
    %65 = vector.extract_strided_slice %63 {offsets = [0, 8], sizes = [24, 8], strides = [1, 1]} : vector<24x32xf32> to vector<24x8xf32>
    %66 = vector.extract_strided_slice %63 {offsets = [0, 16], sizes = [24, 8], strides = [1, 1]} : vector<24x32xf32> to vector<24x8xf32>
    %67 = vector.extract_strided_slice %63 {offsets = [0, 24], sizes = [24, 8], strides = [1, 1]} : vector<24x32xf32> to vector<24x8xf32>
    %68 = arith.maximumf %64, %65 : vector<24x8xf32>
    %69 = arith.maximumf %68, %66 : vector<24x8xf32>
    %70 = arith.maximumf %69, %67 : vector<24x8xf32>
    %71 = arith.subf %64, %70 : vector<24x8xf32>
    %72 = arith.subf %65, %70 : vector<24x8xf32>
    %73 = arith.subf %66, %70 : vector<24x8xf32>
    %74 = arith.subf %67, %70 : vector<24x8xf32>
    %75 = math.exp %71 : vector<24x8xf32>
    %76 = math.exp %72 : vector<24x8xf32>
    %77 = math.exp %73 : vector<24x8xf32>
    %78 = math.exp %74 : vector<24x8xf32>
    %79 = arith.addf %75, %76 : vector<24x8xf32>
    %80 = arith.addf %79, %77 : vector<24x8xf32>
    %81 = arith.addf %80, %78 : vector<24x8xf32>
    %82 = tpu.reciprocal %81 {approx = true} : vector<24x8xf32> -> vector<24x8xf32>
    %83 = math.log %81 : vector<24x8xf32>
    %84 = arith.mulf %75, %82 : vector<24x8xf32>
    %85 = arith.mulf %76, %82 : vector<24x8xf32>
    %86 = arith.mulf %77, %82 : vector<24x8xf32>
    %87 = arith.mulf %78, %82 : vector<24x8xf32>
    %88 = tpu.concatenate %84, %85, %86, %87 in 1 : vector<24x8xf32>, vector<24x8xf32>, vector<24x8xf32>, vector<24x8xf32> -> vector<24x32xf32>
    %89 = vector.extract_strided_slice %0 {offsets = [0, 0], sizes = [24, 8], strides = [1, 1]} : vector<24x40xf32> to vector<24x8xf32>
    %90 = arith.subf %71, %83 : vector<24x8xf32>
    %91 = arith.mulf %89, %90 : vector<24x8xf32>
    %cst_30 = arith.constant dense<0.000000e+00> : vector<24xf32>
    %92 = vector.multi_reduction <add>, %91, %cst_30 [1] : vector<24x8xf32> to vector<24xf32>
    %93 = vector.shape_cast %92 : vector<24xf32> to vector<24x1xf32>
    %94 = vector.extract_strided_slice %0 {offsets = [0, 8], sizes = [24, 8], strides = [1, 1]} : vector<24x40xf32> to vector<24x8xf32>
    %95 = arith.subf %72, %83 : vector<24x8xf32>
    %96 = arith.mulf %94, %95 : vector<24x8xf32>
    %cst_31 = arith.constant dense<0.000000e+00> : vector<24xf32>
    %97 = vector.multi_reduction <add>, %96, %cst_31 [1] : vector<24x8xf32> to vector<24xf32>
    %98 = vector.shape_cast %97 : vector<24xf32> to vector<24x1xf32>
    %99 = vector.extract_strided_slice %0 {offsets = [0, 16], sizes = [24, 8], strides = [1, 1]} : vector<24x40xf32> to vector<24x8xf32>
    %100 = arith.subf %73, %83 : vector<24x8xf32>
    %101 = arith.mulf %99, %100 : vector<24x8xf32>
    %cst_32 = arith.constant dense<0.000000e+00> : vector<24xf32>
    %102 = vector.multi_reduction <add>, %101, %cst_32 [1] : vector<24x8xf32> to vector<24xf32>
    %103 = vector.shape_cast %102 : vector<24xf32> to vector<24x1xf32>
    %104 = vector.extract_strided_slice %0 {offsets = [0, 24], sizes = [24, 8], strides = [1, 1]} : vector<24x40xf32> to vector<24x8xf32>
    %105 = arith.subf %74, %83 : vector<24x8xf32>
    %106 = arith.mulf %104, %105 : vector<24x8xf32>
    %cst_33 = arith.constant dense<0.000000e+00> : vector<24xf32>
    %107 = vector.multi_reduction <add>, %106, %cst_33 [1] : vector<24x8xf32> to vector<24xf32>
    %108 = vector.shape_cast %107 : vector<24xf32> to vector<24x1xf32>
    %109 = arith.addf %93, %98 : vector<24x1xf32>
    %110 = arith.addf %109, %103 : vector<24x1xf32>
    %111 = arith.addf %110, %108 : vector<24x1xf32>
    %112 = vector.extract_strided_slice %21 {offsets = [0, 0], sizes = [24, 10], strides = [1, 1]} : vector<24x13xf32> to vector<24x10xf32>
    %113 = tpu.concatenate %112, %88, %111 in 1 : vector<24x10xf32>, vector<24x32xf32>, vector<24x1xf32> -> vector<24x43xf32>
    %c0_34 = arith.constant 0 : index
    %c0_35 = arith.constant 0 : index
    %114 = vector.load %arg8[%c0_34, %c0_35] : memref<24x43xf32, #tpu.memory_space<vmem>>, vector<24x43xf32>
    tpu.vector_store %arg8[%c0_34, %c0_35], %113 {strides = array<i32>} : memref<24x43xf32, #tpu.memory_space<vmem>>, vector<24x43xf32>,
    return
  }
}

</mosaic_0001>

<llo_original>
// kernel: tpu_custom_call.1
$region0: #{tpu_custom_call.1}
  #allocation0 [shape = 'u32[]', space=smem, size = 0x4, offset = 0x4, fixed_abs, tag = 'smem constant byte address 0x4 - core index']
  #allocation1 [shape = 'u32[144,128]{1,0:T(1,128)}', space=vmem, size = 0x12000, scoped, tag = 'internal scratch']
  %s0 = inlined_call_operand.vmem [shape: f32[24,40], index: 0, kind: input, shape index: {}]
  %s1 = inlined_call_operand.vmem [shape: f32[40,42], index: 1, kind: input, shape index: {}]
  %s2 = inlined_call_operand.vmem [shape: f32[26,20], index: 2, kind: input, shape index: {}]
  %s3 = inlined_call_operand.vmem [shape: f32[20,13], index: 3, kind: input, shape index: {}]
  %s4 = inlined_call_operand.hbm [shape: f32[5,16], index: 4, kind: input, shape index: {}]
  %s5 = inlined_call_operand.vmem [shape: f32[16,12], index: 5, kind: input, shape index: {}]
  %s6 = inlined_call_operand.hbm [shape: f32[12,32], index: 6, kind: input, shape index: {}]
  %s7 = inlined_call_operand.vmem [shape: f32[1,77], index: 7, kind: input, shape index: {}]
  %s8 = inlined_call_operand.hbm [shape: f32[24,43], index: 8, kind: output, shape index: {0}]
  %s9 = inlined_call_operand.hbm [shape: f32[8,6], index: 9, kind: output, shape index: {1}]
  %10 = xla_tuple %s8, %s9
  %s11 = sld [smem:[#allocation0]]
  $region58: #{tpu_custom_call.1} parent=0
    _
  %s13 = ssub.s32 1, %s11
  %s14 = scalar_select 0, %s13, %s11
  $region1: #{tpu_custom_call.1} parent=0
    #allocation2 [shape = 'u8[4096]{0}', space=vmem, size = 0x1000, scoped, tag = 'input window, operand 4, single buffered']
    #allocation3 [shape = 's32[1]{0}', space=sflag, size = 0x4, scoped, tag = 'scoped memory for tpu_custom_call.1']
    #allocation4 [shape = 's32[1]{0}', space=sflag, size = 0x4, scoped, tag = 'scoped memory for tpu_custom_call.1']
    #allocation5 [shape = 'u8[8192]{0}', space=vmem, size = 0x2000, scoped, tag = 'input window, operand 6, single buffered']
    #allocation6 [shape = 's32[1]{0}', space=sflag, size = 0x4, scoped, tag = 'scoped memory for tpu_custom_call.1']
    #allocation7 [shape = 'u8[12288]{0}', space=vmem, size = 0x3000, scoped, tag = 'output window, operand 0, single buffered']
    #allocation8 [shape = 'u8[4096]{0}', space=vmem, size = 0x1000, scoped, tag = 'output window, operand 1, single buffered']
    #allocation9 [shape = 's32[1]{0}', space=sflag, size = 0x4, scoped, tag = 'scoped memory for tpu_custom_call.1']
    %15 = vsyncpa [#allocation3], 0
    %16 = vsyncpa [#allocation6], 0
    %17 = vsyncpa [#allocation4], 0
    %18 = vsyncpa [#allocation9], 0
    // Predicated region
    $region2: #{tpu_custom_call.1} parent=1 // pred_check
      _
    $region3: #{tpu_custom_call.1} parent=1 // pred_check_branch
      %20 = sbr.rel (0) target = $region5
    $region4: #{tpu_custom_call.1} parent=1 // pred_region
      _
    $region5: #{tpu_custom_call.1} parent=1 // pred_fallthru
      _
    // Predicated region
    $region6: #{tpu_custom_call.1} parent=1 // pred_check
      _
    $region7: #{tpu_custom_call.1} parent=1 // pred_check_branch
      %22 = sbr.rel (0) target = $region9
    $region8: #{tpu_custom_call.1} parent=1 // pred_region
      _
    $region9: #{tpu_custom_call.1} parent=1 // pred_fallthru
      _
    // Predicated region
    $region10: #{tpu_custom_call.1} parent=1 // pred_check
      _
    $region11: #{tpu_custom_call.1} parent=1 // pred_check_branch
      %24 = sbr.rel (0) target = $region13
    $region12: #{tpu_custom_call.1} parent=1 // pred_region
      _
    $region13: #{tpu_custom_call.1} parent=1 // pred_fallthru
      _
    // Predicated region
    $region14: #{tpu_custom_call.1} parent=1 // pred_check
      _
    $region15: #{tpu_custom_call.1} parent=1 // pred_check_branch
      %26 = sbr.rel (0) target = $region17
    $region16: #{tpu_custom_call.1} parent=1 // pred_region
      _
    $region17: #{tpu_custom_call.1} parent=1 // pred_fallthru
      _
    // Predicated region
    $region18: #{tpu_custom_call.1} parent=1 // pred_check
      _
    $region19: #{tpu_custom_call.1} parent=1 // pred_check_branch
      %28 = sbr.rel (0) target = $region21
    $region20: #{tpu_custom_call.1} parent=1 // pred_region
      %s30 = ssub.s32 128, 128
      %31 = vsyncadd [#allocation3], %s30
      %s33 = sshll.u32 [#allocation2], 4
      %s34 = int_to_ptr.vmem [resolvable:$true] %s33
      %36 = dma.hbm_to_vmem [thread:$0]  %s4, 128, %s34, [#allocation3]
    $region21: #{tpu_custom_call.1} parent=1 // pred_fallthru
      _
    // Predicated region
    $region22: #{tpu_custom_call.1} parent=1 // pred_check
      _
    $region23: #{tpu_custom_call.1} parent=1 // pred_check_branch
      %38 = sbr.rel (0) target = $region25
    $region24: #{tpu_custom_call.1} parent=1 // pred_region
      _
    $region25: #{tpu_custom_call.1} parent=1 // pred_fallthru
      _
    // Predicated region
    $region26: #{tpu_custom_call.1} parent=1 // pred_check
      _
    $region27: #{tpu_custom_call.1} parent=1 // pred_check_branch
      %40 = sbr.rel (0) target = $region29
    $region28: #{tpu_custom_call.1} parent=1 // pred_region
      %s42 = ssub.s32 256, 256
      %43 = vsyncadd [#allocation6], %s42
      %s44 = sshll.u32 [#allocation5], 4
      %s45 = int_to_ptr.vmem [resolvable:$true] %s44
      %50 = dma.hbm_to_vmem [thread:$0]  %s6, 256, %s45, [#allocation6], 128, 128, 8
    $region29: #{tpu_custom_call.1} parent=1 // pred_fallthru
      _
    // Predicated region
    $region30: #{tpu_custom_call.1} parent=1 // pred_check
      _
    $region31: #{tpu_custom_call.1} parent=1 // pred_check_branch
      %52 = sbr.rel (0) target = $region33
    $region32: #{tpu_custom_call.1} parent=1 // pred_region
      _
    $region33: #{tpu_custom_call.1} parent=1 // pred_fallthru
      _
    // Predicated region
    $region34: #{tpu_custom_call.1} parent=1 // pred_check
      _
    $region35: #{tpu_custom_call.1} parent=1 // pred_check_branch
      %54 = sbr.rel (0) target = $region37
    $region36: #{tpu_custom_call.1} parent=1 // pred_region
      %55 = dma.done [#allocation3], 128
    $region37: #{tpu_custom_call.1} parent=1 // pred_fallthru
      _
    // Predicated region
    $region38: #{tpu_custom_call.1} parent=1 // pred_check
      _
    $region39: #{tpu_custom_call.1} parent=1 // pred_check_branch
      %57 = sbr.rel (0) target = $region41
    $region40: #{tpu_custom_call.1} parent=1 // pred_region
      %58 = dma.done [#allocation6], 256
    $region41: #{tpu_custom_call.1} parent=1 // pred_fallthru
      _
    %v59 = vld [vmem:[%s0] sm:$0xff]
    %v60 = vld [vmem:[%s0 + $0x8] sm:$0xff]
    %v61 = vld [vmem:[%s0 + $0x10] sm:$0xff]
    %v62 = vld [vmem:[%s7] sm:$0x1]
    %v63 = vld [vmem:[%s1] sm:$0xff]
    %v64 = vld [vmem:[%s1 + $0x8] sm:$0xff]
    %v65 = vld [vmem:[%s1 + $0x10] sm:$0xff]
    %v66 = vld [vmem:[%s1 + $0x18] sm:$0xff]
    %v67 = vld [vmem:[%s1 + $0x20] sm:$0xff]
    %vm68 = vcmask 326656
    %v70 = vsel %vm68, %v59, 0
    %v73 = vsel %vm68, %v60, 0
    %v76 = vsel %vm68, %v61, 0
    %78 = vmatprep.subr.mxu0 0.0
    %79 = vmatpush1.msra.mxu0 %v63
    %80 = vmatprep.subr.mxu0 0.0
    %81 = vmatpush1.msra.mxu0 %v64
    %82 = vmatprep.subr.mxu0 0.0
    %83 = vmatpush1.msra.mxu0 %v65
    %84 = vmatprep.subr.mxu0 0.0
    %85 = vmatpush1.msra.mxu0 %v66
    %86 = vmatprep.subr.mxu0 0.0
    %87 = vmatpush1.msra.mxu0 %v67
    %88 = vmatprep.subr.mxu0 0.0
    %89 = vmatpush1.msra.mxu0 0.0
    %90 = vmatprep.subr.mxu0 0.0
    %91 = vmatpush1.msra.mxu0 0.0
    %92 = vmatprep.subr.mxu0 0.0
    %93 = vmatpush1.msra.mxu0 0.0
    %94 = vmatprep.subr.mxu0 0.0
    %95 = vmatpush1.msra.mxu0 0.0
    %96 = vmatprep.subr.mxu0 0.0
    %97 = vmatpush1.msra.mxu0 0.0
    %98 = vmatprep.subr.mxu0 0.0
    %99 = vmatpush1.msra.mxu0 0.0
    %100 = vmatprep.subr.mxu0 0.0
    %101 = vmatpush1.msra.mxu0 0.0
    %102 = vmatprep.subr.mxu0 0.0
    %103 = vmatpush1.msra.mxu0 0.0
    %104 = vmatprep.subr.mxu0 0.0
    %105 = vmatpush1.msra.mxu0 0.0
    %106 = vmatprep.subr.mxu0 0.0
    %107 = vmatpush1.msra.mxu0 0.0
    %108 = vmatprep.subr.mxu0 0.0
    %109 = vmatpush1.msra.mxu0 0.0
    %110 = vmatprep.subr.mxu0 0.0
    %111 = vmatpush1.msra.mxu0 0.0
    %112 = vmatprep.subr.mxu0 0.0
    %113 = vmatpush1.msra.mxu0 0.0
    %114 = vmatprep.subr.mxu0 0.0
    %115 = vmatpush1.msra.mxu0 0.0
    %116 = vmatprep.subr.mxu0 0.0
    %117 = vmatpush1.msra.mxu0 0.0
    %118 = vmatprep.subr.mxu0 0.0
    %119 = vmatpush1.msra.mxu0 0.0
    %120 = vmatprep.subr.mxu0 0.0
    %121 = vmatpush1.msra.mxu0 0.0
    %122 = vmatprep.subr.mxu0 0.0
    %123 = vmatpush1.msra.mxu0 0.0
    %124 = vmatprep.subr.mxu0 0.0
    %125 = vmatpush1.msra.mxu0 0.0
    %126 = vmatprep.subr.mxu0 0.0
    %127 = vmatpush1.msra.mxu0 0.0
    %128 = vmatprep.subr.mxu0 0.0
    %129 = vmatpush1.msra.mxu0 0.0
    %130 = vmatprep.subr.mxu0 0.0
    %131 = vmatpush1.msra.mxu0 0.0
    %132 = vmatprep.subr.mxu0 0.0
    %133 = vmatpush1.msra.mxu0 0.0
    %134 = vmatprep.subr.mxu0 0.0
    %135 = vmatpush1.msra.mxu0 0.0
    %136 = vmatprep.subr.mxu0 0.0
    %137 = vmatpush1.msra.mxu0 0.0
    %138 = vmatprep.subr.mxu0 0.0
    %139 = vmatpush1.msra.mxu0 0.0
    %140 = vmatprep.subr.mxu0 0.0
    %141 = vmatpush1.msra.mxu0 0.0
    %142 = vmatprep.mubr.f32.mxu0 0.0
    %143 = vmatmul.mubr.f32.gmra.mrb[0].mxu0 %v70
    %v144 = vpop.f32.mrb[0].mxu0
    %v145 = vadd.f32 0.0, %v144
    %v146 = vpop.f32.mrb[0].mxu0
    %147 = vmatprep.mubr.f32.mxu0 0.0
    %148 = vmatmul.mubr.f32.gmra.mrb[0].mxu0 %v73
    %v149 = vpop.f32.mrb[0].mxu0
    %v150 = vadd.f32 0.0, %v149
    %v151 = vpop.f32.mrb[0].mxu0
    %152 = vmatprep.mubr.f32.mxu0 0.0
    %153 = vmatmul.mubr.f32.gmra.mrb[0].mxu0 %v76
    %v154 = vpop.f32.mrb[0].mxu0
    %v155 = vadd.f32 0.0, %v154
    %v156 = vpop.f32.mrb[0].mxu0
    %157 = vdwg.mxu0
    %v158 = vmax.f32 %v145, 0.0
    %v159 = vmax.f32 %v150, 0.0
    %v160 = vmax.f32 %v155, 0.0
    %v161 = vld [vmem:[%s2] sm:$0xff]
    %v162 = vld [vmem:[%s2 + $0x8] sm:$0xff]
    %v163 = vld [vmem:[%s2 + $0x10] sm:$0xff]
    %v164 = vld [vmem:[%s2 + $0x18] sm:$0x3]
    %v166 = vlaneseq
    %v167 = vshrl.u32 %v166, 7
    %v168 = vsub.s32 0, %v167
    %v169 = vrot.slane %v62, %v168
    %vm171 = vcmask 211968
    %v173 = vsel %vm171, %v158, 0
    %v176 = vsel %vm171, %v159, 0
    %v179 = vsel %vm171, %v160, 0
    %vm181 = vcmask 1041408
    %v183 = vsel %vm181, %v164, 0
    %185 = vmatprep.subr.mxu0 0.0
    %186 = vmatpush1.msra.mxu0 %v161
    %187 = vmatprep.subr.mxu0 0.0
    %188 = vmatpush1.msra.mxu0 %v162
    %189 = vmatprep.subr.mxu0 0.0
    %190 = vmatpush1.msra.mxu0 %v163
    %191 = vmatprep.subr.mxu0 0.0
    %192 = vmatpush1.msra.mxu0 %v183
    %193 = vmatprep.subr.mxu0 0.0
    %194 = vmatpush1.msra.mxu0 0.0
    %195 = vmatprep.subr.mxu0 0.0
    %196 = vmatpush1.msra.mxu0 0.0
    %197 = vmatprep.subr.mxu0 0.0
    %198 = vmatpush1.msra.mxu0 0.0
    %199 = vmatprep.subr.mxu0 0.0
    %200 = vmatpush1.msra.mxu0 0.0
    %201 = vmatprep.subr.mxu0 0.0
    %202 = vmatpush1.msra.mxu0 0.0
    %203 = vmatprep.subr.mxu0 0.0
    %204 = vmatpush1.msra.mxu0 0.0
    %205 = vmatprep.subr.mxu0 0.0
    %206 = vmatpush1.msra.mxu0 0.0
    %207 = vmatprep.subr.mxu0 0.0
    %208 = vmatpush1.msra.mxu0 0.0
    %209 = vmatprep.subr.mxu0 0.0
    %210 = vmatpush1.msra.mxu0 0.0
    %211 = vmatprep.subr.mxu0 0.0
    %212 = vmatpush1.msra.mxu0 0.0
    %213 = vmatprep.subr.mxu0 0.0
    %214 = vmatpush1.msra.mxu0 0.0
    %215 = vmatprep.subr.mxu0 0.0
    %216 = vmatpush1.msra.mxu0 0.0
    %217 = vmatprep.subr.mxu0 0.0
    %218 = vmatpush1.msra.mxu0 0.0
    %219 = vmatprep.subr.mxu0 0.0
    %220 = vmatpush1.msra.mxu0 0.0
    %221 = vmatprep.subr.mxu0 0.0
    %222 = vmatpush1.msra.mxu0 0.0
    %223 = vmatprep.subr.mxu0 0.0
    %224 = vmatpush1.msra.mxu0 0.0
    %225 = vmatprep.subr.mxu0 0.0
    %226 = vmatpush1.msra.mxu0 0.0
    %227 = vmatprep.subr.mxu0 0.0
    %228 = vmatpush1.msra.mxu0 0.0
    %229 = vmatprep.subr.mxu0 0.0
    %230 = vmatpush1.msra.mxu0 0.0
    %231 = vmatprep.subr.mxu0 0.0
    %232 = vmatpush1.msra.mxu0 0.0
    %233 = vmatprep.subr.mxu0 0.0
    %234 = vmatpush1.msra.mxu0 0.0
    %235 = vmatprep.subr.mxu0 0.0
    %236 = vmatpush1.msra.mxu0 0.0
    %237 = vmatprep.subr.mxu0 0.0
    %238 = vmatpush1.msra.mxu0 0.0
    %239 = vmatprep.subr.mxu0 0.0
    %240 = vmatpush1.msra.mxu0 0.0
    %241 = vmatprep.subr.mxu0 0.0
    %242 = vmatpush1.msra.mxu0 0.0
    %243 = vmatprep.subr.mxu0 0.0
    %244 = vmatpush1.msra.mxu0 0.0
    %245 = vmatprep.subr.mxu0 0.0
    %246 = vmatpush1.msra.mxu0 0.0
    %247 = vmatprep.subr.mxu0 0.0
    %248 = vmatpush1.msra.mxu0 0.0
    %249 = vmatprep.mubr.f32.mxu0 0.0
    %250 = vmatmul.mubr.f32.gmra.mrb[0].mxu0 %v173
    %v251 = vpop.f32.mrb[0].mxu0
    %v252 = vadd.f32 %v169, %v251
    %v253 = vpop.f32.mrb[0].mxu0
    %254 = vmatprep.mubr.f32.mxu0 0.0
    %255 = vmatmul.mubr.f32.gmra.mrb[0].mxu0 %v176
    %v256 = vpop.f32.mrb[0].mxu0
    %v257 = vadd.f32 %v169, %v256
    %v258 = vpop.f32.mrb[0].mxu0
    %259 = vmatprep.mubr.f32.mxu0 0.0
    %260 = vmatmul.mubr.f32.gmra.mrb[0].mxu0 %v179
    %v261 = vpop.f32.mrb[0].mxu0
    %v262 = vadd.f32 %v169, %v261
    %v263 = vpop.f32.mrb[0].mxu0
    %264 = vdwg.mxu0
    %v265 = vmax.f32 %v252, 0.0
    %v266 = vmax.f32 %v257, 0.0
    %v267 = vmax.f32 %v262, 0.0
    %v268 = vld [vmem:[%s3] sm:$0xff]
    %v269 = vld [vmem:[%s3 + $0x8] sm:$0xff]
    %v270 = vld [vmem:[%s3 + $0x10] sm:$0xf]
    %271 = vrot.lane.b32.xlu0 %v169, 108
    %v272 = vpop.permute.xlu0 %271
    %vm274 = vcmask 162816
    %v276 = vsel %vm274, %v265, 0
    %v279 = vsel %vm274, %v266, 0
    %v282 = vsel %vm274, %v267, 0
    %vm284 = vcmask 1043456
    %v286 = vsel %vm284, %v270, 0
    %288 = vmatprep.subr.mxu0 0.0
    %289 = vmatpush1.msra.mxu0 %v268
    %290 = vmatprep.subr.mxu0 0.0
    %291 = vmatpush1.msra.mxu0 %v269
    %292 = vmatprep.subr.mxu0 0.0
    %293 = vmatpush1.msra.mxu0 %v286
    %294 = vmatprep.subr.mxu0 0.0
    %295 = vmatpush1.msra.mxu0 0.0
    %296 = vmatprep.subr.mxu0 0.0
    %297 = vmatpush1.msra.mxu0 0.0
    %298 = vmatprep.subr.mxu0 0.0
    %299 = vmatpush1.msra.mxu0 0.0
    %300 = vmatprep.subr.mxu0 0.0
    %301 = vmatpush1.msra.mxu0 0.0
    %302 = vmatprep.subr.mxu0 0.0
    %303 = vmatpush1.msra.mxu0 0.0
    %304 = vmatprep.subr.mxu0 0.0
    %305 = vmatpush1.msra.mxu0 0.0
    %306 = vmatprep.subr.mxu0 0.0
    %307 = vmatpush1.msra.mxu0 0.0
    %308 = vmatprep.subr.mxu0 0.0
    %309 = vmatpush1.msra.mxu0 0.0
    %310 = vmatprep.subr.mxu0 0.0
    %311 = vmatpush1.msra.mxu0 0.0
    %312 = vmatprep.subr.mxu0 0.0
    %313 = vmatpush1.msra.mxu0 0.0
    %314 = vmatprep.subr.mxu0 0.0
    %315 = vmatpush1.msra.mxu0 0.0
    %316 = vmatprep.subr.mxu0 0.0
    %317 = vmatpush1.msra.mxu0 0.0
    %318 = vmatprep.subr.mxu0 0.0
    %319 = vmatpush1.msra.mxu0 0.0
    %320 = vmatprep.subr.mxu0 0.0
    %321 = vmatpush1.msra.mxu0 0.0
    %322 = vmatprep.subr.mxu0 0.0
    %323 = vmatpush1.msra.mxu0 0.0
    %324 = vmatprep.subr.mxu0 0.0
    %325 = vmatpush1.msra.mxu0 0.0
    %326 = vmatprep.subr.mxu0 0.0
    %327 = vmatpush1.msra.mxu0 0.0
    %328 = vmatprep.subr.mxu0 0.0
    %329 = vmatpush1.msra.mxu0 0.0
    %330 = vmatprep.subr.mxu0 0.0
    %331 = vmatpush1.msra.mxu0 0.0
    %332 = vmatprep.subr.mxu0 0.0
    %333 = vmatpush1.msra.mxu0 0.0
    %334 = vmatprep.subr.mxu0 0.0
    %335 = vmatpush1.msra.mxu0 0.0
    %336 = vmatprep.subr.mxu0 0.0
    %337 = vmatpush1.msra.mxu0 0.0
    %338 = vmatprep.subr.mxu0 0.0
    %339 = vmatpush1.msra.mxu0 0.0
    %340 = vmatprep.subr.mxu0 0.0
    %341 = vmatpush1.msra.mxu0 0.0
    %342 = vmatprep.subr.mxu0 0.0
    %343 = vmatpush1.msra.mxu0 0.0
    %344 = vmatprep.subr.mxu0 0.0
    %345 = vmatpush1.msra.mxu0 0.0
    %346 = vmatprep.subr.mxu0 0.0
    %347 = vmatpush1.msra.mxu0 0.0
    %348 = vmatprep.subr.mxu0 0.0
    %349 = vmatpush1.msra.mxu0 0.0
    %350 = vmatprep.subr.mxu0 0.0
    %351 = vmatpush1.msra.mxu0 0.0
    %352 = vmatprep.mubr.f32.mxu0 0.0
    %353 = vmatmul.mubr.f32.gmra.mrb[0].mxu0 %v276
    %v354 = vpop.f32.mrb[0].mxu0
    %v355 = vadd.f32 %v272, %v354
    %v356 = vpop.f32.mrb[0].mxu0
    %357 = vmatprep.mubr.f32.mxu0 0.0
    %358 = vmatmul.mubr.f32.gmra.mrb[0].mxu0 %v279
    %v359 = vpop.f32.mrb[0].mxu0
    %v360 = vadd.f32 %v272, %v359
    %v361 = vpop.f32.mrb[0].mxu0
    %362 = vmatprep.mubr.f32.mxu0 0.0
    %363 = vmatmul.mubr.f32.gmra.mrb[0].mxu0 %v282
    %v364 = vpop.f32.mrb[0].mxu0
    %v365 = vadd.f32 %v272, %v364
    %v366 = vpop.f32.mrb[0].mxu0
    %367 = vdwg.mxu0
    %vm368 = vcmask 105552
    %v369 = vsel %vm368, %v355, -inf
    %370 = vmax.xlane.f32.xlu0 %v369
    %v371 = vpop.xlane.xlu0 %370
    %v372 = vsub.f32 %v355, %v371
    %v373 = vmul.f32 %v372, 1.442695
    %v374 = vpow.pop %v373
    %376 = vrot.lane.b32.xlu0 %v374, 118
    %v377 = vpop.permute.xlu0 %376
    %vm379 = vcmask 23552
    %v380 = vsel %vm379, %v377, 0.0
    %381 = vadd.xlane.f32.xlu0 %v380
    %v382 = vpop.xlane.xlu0 %381
    %v383 = vrcp.pop %v382
    %v384 = vmul.f32 %v374, %v383
    %v385 = vlog2.pop %v382
    %v386 = vmul.f32 %v385, 0.6931472
    %v387 = vsub.f32 %v372, %v386
    %389 = vrot.lane.b32.xlu0 %v384, 118
    %v390 = vpop.permute.xlu0 %389
    %393 = vrot.lane.b32.xlu0 %v387, 121
    %v394 = vpop.permute.xlu0 %393
    %v396 = vsel %vm379, %v390, %v394
    %vm397 = vcmask 48128
    %398 = vst.msk [vmem:[#allocation8] sm:$0xff] %vm397, %v396
    %v399 = vmul.f32 %v355, 1.442695
    %v400 = vpow.pop %v399
    %v401 = vmul.f32 %v360, 1.442695
    %v402 = vpow.pop %v401
    %v403 = vmul.f32 %v365, 1.442695
    %v404 = vpow.pop %v403
    %405 = vrot.lane.b32.xlu0 %v59, 98
    %v406 = vpop.permute.xlu0 %405
    %407 = vrot.lane.b32.xlu0 %v60, 98
    %v408 = vpop.permute.xlu0 %407
    %409 = vrot.lane.b32.xlu0 %v61, 98
    %v410 = vpop.permute.xlu0 %409
    %v414 = vmul.f32 %v400, %v406
    %v415 = vmul.f32 %v402, %v408
    %v416 = vmul.f32 %v404, %v410
    %420 = vrot.lane.b32.xlu0 %v414, 123
    %v421 = vpop.permute.xlu0 %420
    %422 = vrot.lane.b32.xlu0 %v415, 123
    %v423 = vpop.permute.xlu0 %422
    %424 = vrot.lane.b32.xlu0 %v416, 123
    %v425 = vpop.permute.xlu0 %424
    %v429 = vadd.f32 %v355, %v421
    %v430 = vadd.f32 %v360, %v423
    %v431 = vadd.f32 %v365, %v425
    %v432 = vld [vmem:[#allocation2] sm:$0x1f]
    %436 = vrot.lane.b32.xlu0 %v145, 102
    %v437 = vpop.permute.xlu0 %436
    %438 = vrot.lane.b32.xlu0 %v150, 102
    %v439 = vpop.permute.xlu0 %438
    %440 = vrot.lane.b32.xlu0 %v155, 102
    %v441 = vpop.permute.xlu0 %440
    %vm445 = vcmask 39936
    %v447 = vsel %vm445, %v429, 0
    %v450 = vsel %vm445, %v430, 0
    %v453 = vsel %vm445, %v431, 0
    %vm455 = vcmask 1044480
    %v457 = vsel %vm455, %v432, 0
    %459 = vmatprep.subr.mxu0 0.0
    %460 = vmatpush1.msra.mxu0 %v457
    %461 = vmatprep.subr.mxu0 0.0
    %462 = vmatpush1.msra.mxu0 0.0
    %463 = vmatprep.subr.mxu0 0.0
    %464 = vmatpush1.msra.mxu0 0.0
    %465 = vmatprep.subr.mxu0 0.0
    %466 = vmatpush1.msra.mxu0 0.0
    %467 = vmatprep.subr.mxu0 0.0
    %468 = vmatpush1.msra.mxu0 0.0
    %469 = vmatprep.subr.mxu0 0.0
    %470 = vmatpush1.msra.mxu0 0.0
    %471 = vmatprep.subr.mxu0 0.0
    %472 = vmatpush1.msra.mxu0 0.0
    %473 = vmatprep.subr.mxu0 0.0
    %474 = vmatpush1.msra.mxu0 0.0
    %475 = vmatprep.subr.mxu0 0.0
    %476 = vmatpush1.msra.mxu0 0.0
    %477 = vmatprep.subr.mxu0 0.0
    %478 = vmatpush1.msra.mxu0 0.0
    %479 = vmatprep.subr.mxu0 0.0
    %480 = vmatpush1.msra.mxu0 0.0
    %481 = vmatprep.subr.mxu0 0.0
    %482 = vmatpush1.msra.mxu0 0.0
    %483 = vmatprep.subr.mxu0 0.0
    %484 = vmatpush1.msra.mxu0 0.0
    %485 = vmatprep.subr.mxu0 0.0
    %486 = vmatpush1.msra.mxu0 0.0
    %487 = vmatprep.subr.mxu0 0.0
    %488 = vmatpush1.msra.mxu0 0.0
    %489 = vmatprep.subr.mxu0 0.0
    %490 = vmatpush1.msra.mxu0 0.0
    %491 = vmatprep.subr.mxu0 0.0
    %492 = vmatpush1.msra.mxu0 0.0
    %493 = vmatprep.subr.mxu0 0.0
    %494 = vmatpush1.msra.mxu0 0.0
    %495 = vmatprep.subr.mxu0 0.0
    %496 = vmatpush1.msra.mxu0 0.0
    %497 = vmatprep.subr.mxu0 0.0
    %498 = vmatpush1.msra.mxu0 0.0
    %499 = vmatprep.subr.mxu0 0.0
    %500 = vmatpush1.msra.mxu0 0.0
    %501 = vmatprep.subr.mxu0 0.0
    %502 = vmatpush1.msra.mxu0 0.0
    %503 = vmatprep.subr.mxu0 0.0
    %504 = vmatpush1.msra.mxu0 0.0
    %505 = vmatprep.subr.mxu0 0.0
    %506 = vmatpush1.msra.mxu0 0.0
    %507 = vmatprep.subr.mxu0 0.0
    %508 = vmatpush1.msra.mxu0 0.0
    %509 = vmatprep.subr.mxu0 0.0
    %510 = vmatpush1.msra.mxu0 0.0
    %511 = vmatprep.subr.mxu0 0.0
    %512 = vmatpush1.msra.mxu0 0.0
    %513 = vmatprep.subr.mxu0 0.0
    %514 = vmatpush1.msra.mxu0 0.0
    %515 = vmatprep.subr.mxu0 0.0
    %516 = vmatpush1.msra.mxu0 0.0
    %517 = vmatprep.subr.mxu0 0.0
    %518 = vmatpush1.msra.mxu0 0.0
    %519 = vmatprep.subr.mxu0 0.0
    %520 = vmatpush1.msra.mxu0 0.0
    %521 = vmatprep.subr.mxu0 0.0
    %522 = vmatpush1.msra.mxu0 0.0
    %523 = vmatprep.mubr.f32.mxu0 0.0
    %524 = vmatmul.mubr.f32.gmra.mrb[0].mxu0 %v447
    %v525 = vpop.f32.mrb[0].mxu0
    %v526 = vadd.f32 %v437, %v525
    %v527 = vpop.f32.mrb[0].mxu0
    %528 = vmatprep.mubr.f32.mxu0 0.0
    %529 = vmatmul.mubr.f32.gmra.mrb[0].mxu0 %v450
    %v530 = vpop.f32.mrb[0].mxu0
    %v531 = vadd.f32 %v439, %v530
    %v532 = vpop.f32.mrb[0].mxu0
    %533 = vmatprep.mubr.f32.mxu0 0.0
    %534 = vmatmul.mubr.f32.gmra.mrb[0].mxu0 %v453
    %v535 = vpop.f32.mrb[0].mxu0
    %v536 = vadd.f32 %v441, %v535
    %v537 = vpop.f32.mrb[0].mxu0
    %538 = vdwg.mxu0
    %v539 = vmax.f32 %v526, 0.0
    %v540 = vmax.f32 %v531, 0.0
    %v541 = vmax.f32 %v536, 0.0
    %v542 = vld [vmem:[%s5] sm:$0xff]
    %v543 = vld [vmem:[%s5 + $0x8] sm:$0xff]
    %544 = vrot.lane.b32.xlu0 %v169, 95
    %v545 = vpop.permute.xlu0 %544
    %vm547 = vcmask 130048
    %v549 = vsel %vm547, %v539, 0
    %v552 = vsel %vm547, %v540, 0
    %v555 = vsel %vm547, %v541, 0
    %557 = vmatprep.subr.mxu0 0.0
    %558 = vmatpush1.msra.mxu0 %v542
    %559 = vmatprep.subr.mxu0 0.0
    %560 = vmatpush1.msra.mxu0 %v543
    %561 = vmatprep.subr.mxu0 0.0
    %562 = vmatpush1.msra.mxu0 0.0
    %563 = vmatprep.subr.mxu0 0.0
    %564 = vmatpush1.msra.mxu0 0.0
    %565 = vmatprep.subr.mxu0 0.0
    %566 = vmatpush1.msra.mxu0 0.0
    %567 = vmatprep.subr.mxu0 0.0
    %568 = vmatpush1.msra.mxu0 0.0
    %569 = vmatprep.subr.mxu0 0.0
    %570 = vmatpush1.msra.mxu0 0.0
    %571 = vmatprep.subr.mxu0 0.0
    %572 = vmatpush1.msra.mxu0 0.0
    %573 = vmatprep.subr.mxu0 0.0
    %574 = vmatpush1.msra.mxu0 0.0
    %575 = vmatprep.subr.mxu0 0.0
    %576 = vmatpush1.msra.mxu0 0.0
    %577 = vmatprep.subr.mxu0 0.0
    %578 = vmatpush1.msra.mxu0 0.0
    %579 = vmatprep.subr.mxu0 0.0
    %580 = vmatpush1.msra.mxu0 0.0
    %581 = vmatprep.subr.mxu0 0.0
    %582 = vmatpush1.msra.mxu0 0.0
    %583 = vmatprep.subr.mxu0 0.0
    %584 = vmatpush1.msra.mxu0 0.0
    %585 = vmatprep.subr.mxu0 0.0
    %586 = vmatpush1.msra.mxu0 0.0
    %587 = vmatprep.subr.mxu0 0.0
    %588 = vmatpush1.msra.mxu0 0.0
    %589 = vmatprep.subr.mxu0 0.0
    %590 = vmatpush1.msra.mxu0 0.0
    %591 = vmatprep.subr.mxu0 0.0
    %592 = vmatpush1.msra.mxu0 0.0
    %593 = vmatprep.subr.mxu0 0.0
    %594 = vmatpush1.msra.mxu0 0.0
    %595 = vmatprep.subr.mxu0 0.0
    %596 = vmatpush1.msra.mxu0 0.0
    %597 = vmatprep.subr.mxu0 0.0
    %598 = vmatpush1.msra.mxu0 0.0
    %599 = vmatprep.subr.mxu0 0.0
    %600 = vmatpush1.msra.mxu0 0.0
    %601 = vmatprep.subr.mxu0 0.0
    %602 = vmatpush1.msra.mxu0 0.0
    %603 = vmatprep.subr.mxu0 0.0
    %604 = vmatpush1.msra.mxu0 0.0
    %605 = vmatprep.subr.mxu0 0.0
    %606 = vmatpush1.msra.mxu0 0.0
    %607 = vmatprep.subr.mxu0 0.0
    %608 = vmatpush1.msra.mxu0 0.0
    %609 = vmatprep.subr.mxu0 0.0
    %610 = vmatpush1.msra.mxu0 0.0
    %611 = vmatprep.subr.mxu0 0.0
    %612 = vmatpush1.msra.mxu0 0.0
    %613 = vmatprep.subr.mxu0 0.0
    %614 = vmatpush1.msra.mxu0 0.0
    %615 = vmatprep.subr.mxu0 0.0
    %616 = vmatpush1.msra.mxu0 0.0
    %617 = vmatprep.subr.mxu0 0.0
    %618 = vmatpush1.msra.mxu0 0.0
    %619 = vmatprep.subr.mxu0 0.0
    %620 = vmatpush1.msra.mxu0 0.0
    %621 = vmatprep.mubr.f32.mxu0 0.0
    %622 = vmatmul.mubr.f32.gmra.mrb[0].mxu0 %v549
    %v623 = vpop.f32.mrb[0].mxu0
    %v624 = vadd.f32 %v545, %v623
    %v625 = vpop.f32.mrb[0].mxu0
    %626 = vmatprep.mubr.f32.mxu0 0.0
    %627 = vmatmul.mubr.f32.gmra.mrb[0].mxu0 %v552
    %v628 = vpop.f32.mrb[0].mxu0
    %v629 = vadd.f32 %v545, %v628
    %v630 = vpop.f32.mrb[0].mxu0
    %631 = vmatprep.mubr.f32.mxu0 0.0
    %632 = vmatmul.mubr.f32.gmra.mrb[0].mxu0 %v555
    %v633 = vpop.f32.mrb[0].mxu0
    %v634 = vadd.f32 %v545, %v633
    %v635 = vpop.f32.mrb[0].mxu0
    %636 = vdwg.mxu0
    %v637 = vmul.f32 %v624, 0.5
    %v638 = vmul.f32 %v629, 0.5
    %v639 = vmul.f32 %v634, 0.5
    %v640 = vtanh.pop %v637
    %v641 = vtanh.pop %v638
    %v642 = vtanh.pop %v639
    %v643 = vadd.f32 %v640, 1.0
    %v644 = vadd.f32 %v641, 1.0
    %v645 = vadd.f32 %v642, 1.0
    %v646 = vmul.f32 %v643, 0.5
    %v647 = vmul.f32 %v644, 0.5
    %v648 = vmul.f32 %v645, 0.5
    %v649 = vld [vmem:[#allocation5] sm:$0xff]
    %v650 = vld [vmem:[#allocation5 + $0x8] sm:$0xf]
    %651 = vrot.lane.b32.xlu0 %v169, 83
    %v652 = vpop.permute.xlu0 %651
    %vm654 = vcmask 97280
    %v656 = vsel %vm654, %v646, 0
    %v659 = vsel %vm654, %v647, 0
    %v662 = vsel %vm654, %v648, 0
    %v665 = vsel %vm284, %v650, 0
    %667 = vmatprep.subr.mxu0 0.0
    %668 = vmatpush1.msra.mxu0 %v649
    %669 = vmatprep.subr.mxu0 0.0
    %670 = vmatpush1.msra.mxu0 %v665
    %671 = vmatprep.subr.mxu0 0.0
    %672 = vmatpush1.msra.mxu0 0.0
    %673 = vmatprep.subr.mxu0 0.0
    %674 = vmatpush1.msra.mxu0 0.0
    %675 = vmatprep.subr.mxu0 0.0
    %676 = vmatpush1.msra.mxu0 0.0
    %677 = vmatprep.subr.mxu0 0.0
    %678 = vmatpush1.msra.mxu0 0.0
    %679 = vmatprep.subr.mxu0 0.0
    %680 = vmatpush1.msra.mxu0 0.0
    %681 = vmatprep.subr.mxu0 0.0
    %682 = vmatpush1.msra.mxu0 0.0
    %683 = vmatprep.subr.mxu0 0.0
    %684 = vmatpush1.msra.mxu0 0.0
    %685 = vmatprep.subr.mxu0 0.0
    %686 = vmatpush1.msra.mxu0 0.0
    %687 = vmatprep.subr.mxu0 0.0
    %688 = vmatpush1.msra.mxu0 0.0
    %689 = vmatprep.subr.mxu0 0.0
    %690 = vmatpush1.msra.mxu0 0.0
    %691 = vmatprep.subr.mxu0 0.0
    %692 = vmatpush1.msra.mxu0 0.0
    %693 = vmatprep.subr.mxu0 0.0
    %694 = vmatpush1.msra.mxu0 0.0
    %695 = vmatprep.subr.mxu0 0.0
    %696 = vmatpush1.msra.mxu0 0.0
    %697 = vmatprep.subr.mxu0 0.0
    %698 = vmatpush1.msra.mxu0 0.0
    %699 = vmatprep.subr.mxu0 0.0
    %700 = vmatpush1.msra.mxu0 0.0
    %701 = vmatprep.subr.mxu0 0.0
    %702 = vmatpush1.msra.mxu0 0.0
    %703 = vmatprep.subr.mxu0 0.0
    %704 = vmatpush1.msra.mxu0 0.0
    %705 = vmatprep.subr.mxu0 0.0
    %706 = vmatpush1.msra.mxu0 0.0
    %707 = vmatprep.subr.mxu0 0.0
    %708 = vmatpush1.msra.mxu0 0.0
    %709 = vmatprep.subr.mxu0 0.0
    %710 = vmatpush1.msra.mxu0 0.0
    %711 = vmatprep.subr.mxu0 0.0
    %712 = vmatpush1.msra.mxu0 0.0
    %713 = vmatprep.subr.mxu0 0.0
    %714 = vmatpush1.msra.mxu0 0.0
    %715 = vmatprep.subr.mxu0 0.0
    %716 = vmatpush1.msra.mxu0 0.0
    %717 = vmatprep.subr.mxu0 0.0
    %718 = vmatpush1.msra.mxu0 0.0
    %719 = vmatprep.subr.mxu0 0.0
    %720 = vmatpush1.msra.mxu0 0.0
    %721 = vmatprep.subr.mxu0 0.0
    %722 = vmatpush1.msra.mxu0 0.0
    %723 = vmatprep.subr.mxu0 0.0
    %724 = vmatpush1.msra.mxu0 0.0
    %725 = vmatprep.subr.mxu0 0.0
    %726 = vmatpush1.msra.mxu0 0.0
    %727 = vmatprep.subr.mxu0 0.0
    %728 = vmatpush1.msra.mxu0 0.0
    %729 = vmatprep.subr.mxu0 0.0
    %730 = vmatpush1.msra.mxu0 0.0
    %731 = vmatprep.mubr.f32.mxu0 0.0
    %732 = vmatmul.mubr.f32.gmra.mrb[0].mxu0 %v656
    %v733 = vpop.f32.mrb[0].mxu0
    %v734 = vadd.f32 %v652, %v733
    %v735 = vpop.f32.mrb[0].mxu0
    %736 = vmatprep.mubr.f32.mxu0 0.0
    %737 = vmatmul.mubr.f32.gmra.mrb[0].mxu0 %v659
    %v738 = vpop.f32.mrb[0].mxu0
    %v739 = vadd.f32 %v652, %v738
    %v740 = vpop.f32.mrb[0].mxu0
    %741 = vmatprep.mubr.f32.mxu0 0.0
    %742 = vmatmul.mubr.f32.gmra.mrb[0].mxu0 %v662
    %v743 = vpop.f32.mrb[0].mxu0
    %v744 = vadd.f32 %v652, %v743
    %v745 = vpop.f32.mrb[0].mxu0
    %746 = vdwg.mxu0
    %750 = vrot.lane.b32.xlu0 %v734, 120
    %v751 = vpop.permute.xlu0 %750
    %752 = vrot.lane.b32.xlu0 %v739, 120
    %v753 = vpop.permute.xlu0 %752
    %754 = vrot.lane.b32.xlu0 %v744, 120
    %v755 = vpop.permute.xlu0 %754
    %v759 = vmax.f32 %v734, %v751
    %v760 = vmax.f32 %v739, %v753
    %v761 = vmax.f32 %v744, %v755
    %762 = vrot.lane.b32.xlu0 %v734, 112
    %v763 = vpop.permute.xlu0 %762
    %764 = vrot.lane.b32.xlu0 %v739, 112
    %v765 = vpop.permute.xlu0 %764
    %766 = vrot.lane.b32.xlu0 %v744, 112
    %v767 = vpop.permute.xlu0 %766
    %v771 = vmax.f32 %v759, %v763
    %v772 = vmax.f32 %v760, %v765
    %v773 = vmax.f32 %v761, %v767
    %774 = vrot.lane.b32.xlu0 %v734, 104
    %v775 = vpop.permute.xlu0 %774
    %776 = vrot.lane.b32.xlu0 %v739, 104
    %v777 = vpop.permute.xlu0 %776
    %778 = vrot.lane.b32.xlu0 %v744, 104
    %v779 = vpop.permute.xlu0 %778
    %v783 = vmax.f32 %v771, %v775
    %v784 = vmax.f32 %v772, %v777
    %v785 = vmax.f32 %v773, %v779
    %v786 = vsub.f32 %v734, %v783
    %v787 = vsub.f32 %v739, %v784
    %v788 = vsub.f32 %v744, %v785
    %792 = vrot.lane.b32.xlu0 %v783, 8
    %v793 = vpop.permute.xlu0 %792
    %794 = vrot.lane.b32.xlu0 %v784, 8
    %v795 = vpop.permute.xlu0 %794
    %796 = vrot.lane.b32.xlu0 %v785, 8
    %v797 = vpop.permute.xlu0 %796
    %v801 = vsub.f32 %v734, %v793
    %v802 = vsub.f32 %v739, %v795
    %v803 = vsub.f32 %v744, %v797
    %804 = vrot.lane.b32.xlu0 %v783, 16
    %v805 = vpop.permute.xlu0 %804
    %806 = vrot.lane.b32.xlu0 %v784, 16
    %v807 = vpop.permute.xlu0 %806
    %808 = vrot.lane.b32.xlu0 %v785, 16
    %v809 = vpop.permute.xlu0 %808
    %v813 = vsub.f32 %v734, %v805
    %v814 = vsub.f32 %v739, %v807
    %v815 = vsub.f32 %v744, %v809
    %816 = vrot.lane.b32.xlu0 %v783, 24
    %v817 = vpop.permute.xlu0 %816
    %818 = vrot.lane.b32.xlu0 %v784, 24
    %v819 = vpop.permute.xlu0 %818
    %820 = vrot.lane.b32.xlu0 %v785, 24
    %v821 = vpop.permute.xlu0 %820
    %v825 = vsub.f32 %v734, %v817
    %v826 = vsub.f32 %v739, %v819
    %v827 = vsub.f32 %v744, %v821
    %v828 = vmul.f32 %v786, 1.442695
    %v829 = vpow.pop %v828
    %v830 = vmul.f32 %v787, 1.442695
    %v831 = vpow.pop %v830
    %v832 = vmul.f32 %v788, 1.442695
    %v833 = vpow.pop %v832
    %v834 = vmul.f32 %v801, 1.442695
    %v835 = vpow.pop %v834
    %v836 = vmul.f32 %v802, 1.442695
    %v837 = vpow.pop %v836
    %v838 = vmul.f32 %v803, 1.442695
    %v839 = vpow.pop %v838
    %v840 = vmul.f32 %v813, 1.442695
    %v841 = vpow.pop %v840
    %v842 = vmul.f32 %v814, 1.442695
    %v843 = vpow.pop %v842
    %v844 = vmul.f32 %v815, 1.442695
    %v845 = vpow.pop %v844
    %v846 = vmul.f32 %v825, 1.442695
    %v847 = vpow.pop %v846
    %v848 = vmul.f32 %v826, 1.442695
    %v849 = vpow.pop %v848
    %v850 = vmul.f32 %v827, 1.442695
    %v851 = vpow.pop %v850
    %855 = vrot.lane.b32.xlu0 %v835, 120
    %v856 = vpop.permute.xlu0 %855
    %857 = vrot.lane.b32.xlu0 %v837, 120
    %v858 = vpop.permute.xlu0 %857
    %859 = vrot.lane.b32.xlu0 %v839, 120
    %v860 = vpop.permute.xlu0 %859
    %v864 = vadd.f32 %v829, %v856
    %v865 = vadd.f32 %v831, %v858
    %v866 = vadd.f32 %v833, %v860
    %870 = vrot.lane.b32.xlu0 %v841, 112
    %v871 = vpop.permute.xlu0 %870
    %872 = vrot.lane.b32.xlu0 %v843, 112
    %v873 = vpop.permute.xlu0 %872
    %874 = vrot.lane.b32.xlu0 %v845, 112
    %v875 = vpop.permute.xlu0 %874
    %v879 = vadd.f32 %v864, %v871
    %v880 = vadd.f32 %v865, %v873
    %v881 = vadd.f32 %v866, %v875
    %885 = vrot.lane.b32.xlu0 %v847, 104
    %v886 = vpop.permute.xlu0 %885
    %887 = vrot.lane.b32.xlu0 %v849, 104
    %v888 = vpop.permute.xlu0 %887
    %889 = vrot.lane.b32.xlu0 %v851, 104
    %v890 = vpop.permute.xlu0 %889
    %v894 = vadd.f32 %v879, %v886
    %v895 = vadd.f32 %v880, %v888
    %v896 = vadd.f32 %v881, %v890
    %v897 = vrcp.pop %v894
    %v898 = vrcp.pop %v895
    %v899 = vrcp.pop %v896
    %v900 = vlog2.pop %v894
    %v901 = vmul.f32 %v900, 0.6931472
    %v902 = vlog2.pop %v895
    %v903 = vmul.f32 %v902, 0.6931472
    %v904 = vlog2.pop %v896
    %v905 = vmul.f32 %v904, 0.6931472
    %v906 = vmul.f32 %v829, %v897
    %v907 = vmul.f32 %v831, %v898
    %v908 = vmul.f32 %v833, %v899
    %912 = vrot.lane.b32.xlu0 %v897, 8
    %v913 = vpop.permute.xlu0 %912
    %914 = vrot.lane.b32.xlu0 %v898, 8
    %v915 = vpop.permute.xlu0 %914
    %916 = vrot.lane.b32.xlu0 %v899, 8
    %v917 = vpop.permute.xlu0 %916
    %v921 = vmul.f32 %v835, %v913
    %v922 = vmul.f32 %v837, %v915
    %v923 = vmul.f32 %v839, %v917
    %924 = vrot.lane.b32.xlu0 %v897, 16
    %v925 = vpop.permute.xlu0 %924
    %926 = vrot.lane.b32.xlu0 %v898, 16
    %v927 = vpop.permute.xlu0 %926
    %928 = vrot.lane.b32.xlu0 %v899, 16
    %v929 = vpop.permute.xlu0 %928
    %v933 = vmul.f32 %v841, %v925
    %v934 = vmul.f32 %v843, %v927
    %v935 = vmul.f32 %v845, %v929
    %936 = vrot.lane.b32.xlu0 %v897, 24
    %v937 = vpop.permute.xlu0 %936
    %938 = vrot.lane.b32.xlu0 %v898, 24
    %v939 = vpop.permute.xlu0 %938
    %940 = vrot.lane.b32.xlu0 %v899, 24
    %v941 = vpop.permute.xlu0 %940
    %v945 = vmul.f32 %v847, %v937
    %v946 = vmul.f32 %v849, %v939
    %v947 = vmul.f32 %v851, %v941
    %vm948 = vcmask 64512
    %v949 = vsel %vm948, %v906, %v921
    %v950 = vsel %vm948, %v907, %v922
    %v951 = vsel %vm948, %v908, %v923
    %v952 = vsel %vm547, %v949, %v933
    %v953 = vsel %vm547, %v950, %v934
    %v954 = vsel %vm547, %v951, %v935
    %vm955 = vcmask 195584
    %v956 = vsel %vm955, %v952, %v945
    %v957 = vsel %vm955, %v953, %v946
    %v958 = vsel %vm955, %v954, %v947
    %v959 = vsub.f32 %v786, %v901
    %v960 = vsub.f32 %v787, %v903
    %v961 = vsub.f32 %v788, %v905
    %v962 = vmul.f32 %v59, %v959
    %v963 = vmul.f32 %v60, %v960
    %v964 = vmul.f32 %v61, %v961
    %v965 = vsel %vm948, %v962, 0.0
    %966 = vadd.xlane.f32.xlu0 %v965
    %v967 = vpop.xlane.xlu0 %966
    %v968 = vsel %vm948, %v963, 0.0
    %969 = vadd.xlane.f32.xlu0 %v968
    %v970 = vpop.xlane.xlu0 %969
    %v971 = vsel %vm948, %v964, 0.0
    %972 = vadd.xlane.f32.xlu0 %v971
    %v973 = vpop.xlane.xlu0 %972
    %977 = vrot.lane.b32.xlu0 %v901, 8
    %v978 = vpop.permute.xlu0 %977
    %979 = vrot.lane.b32.xlu0 %v903, 8
    %v980 = vpop.permute.xlu0 %979
    %981 = vrot.lane.b32.xlu0 %v905, 8
    %v982 = vpop.permute.xlu0 %981
    %v986 = vsub.f32 %v801, %v978
    %v987 = vsub.f32 %v802, %v980
    %v988 = vsub.f32 %v803, %v982
    %v989 = vmul.f32 %v59, %v986
    %v990 = vmul.f32 %v60, %v987
    %v991 = vmul.f32 %v61, %v988
    %995 = vrot.lane.b32.xlu0 %v989, 120
    %v996 = vpop.permute.xlu0 %995
    %997 = vrot.lane.b32.xlu0 %v990, 120
    %v998 = vpop.permute.xlu0 %997
    %999 = vrot.lane.b32.xlu0 %v991, 120
    %v1000 = vpop.permute.xlu0 %999
    %v1004 = vsel %vm948, %v996, 0.0
    %1005 = vadd.xlane.f32.xlu0 %v1004
    %v1006 = vpop.xlane.xlu0 %1005
    %v1007 = vsel %vm948, %v998, 0.0
    %1008 = vadd.xlane.f32.xlu0 %v1007
    %v1009 = vpop.xlane.xlu0 %1008
    %v1010 = vsel %vm948, %v1000, 0.0
    %1011 = vadd.xlane.f32.xlu0 %v1010
    %v1012 = vpop.xlane.xlu0 %1011
    %1013 = vrot.lane.b32.xlu0 %v901, 16
    %v1014 = vpop.permute.xlu0 %1013
    %1015 = vrot.lane.b32.xlu0 %v903, 16
    %v1016 = vpop.permute.xlu0 %1015
    %1017 = vrot.lane.b32.xlu0 %v905, 16
    %v1018 = vpop.permute.xlu0 %1017
    %v1022 = vsub.f32 %v813, %v1014
    %v1023 = vsub.f32 %v814, %v1016
    %v1024 = vsub.f32 %v815, %v1018
    %v1025 = vmul.f32 %v59, %v1022
    %v1026 = vmul.f32 %v60, %v1023
    %v1027 = vmul.f32 %v61, %v1024
    %1031 = vrot.lane.b32.xlu0 %v1025, 112
    %v1032 = vpop.permute.xlu0 %1031
    %1033 = vrot.lane.b32.xlu0 %v1026, 112
    %v1034 = vpop.permute.xlu0 %1033
    %1035 = vrot.lane.b32.xlu0 %v1027, 112
    %v1036 = vpop.permute.xlu0 %1035
    %v1040 = vsel %vm948, %v1032, 0.0
    %1041 = vadd.xlane.f32.xlu0 %v1040
    %v1042 = vpop.xlane.xlu0 %1041
    %v1043 = vsel %vm948, %v1034, 0.0
    %1044 = vadd.xlane.f32.xlu0 %v1043
    %v1045 = vpop.xlane.xlu0 %1044
    %v1046 = vsel %vm948, %v1036, 0.0
    %1047 = vadd.xlane.f32.xlu0 %v1046
    %v1048 = vpop.xlane.xlu0 %1047
    %1049 = vrot.lane.b32.xlu0 %v901, 24
    %v1050 = vpop.permute.xlu0 %1049
    %1051 = vrot.lane.b32.xlu0 %v903, 24
    %v1052 = vpop.permute.xlu0 %1051
    %1053 = vrot.lane.b32.xlu0 %v905, 24
    %v1054 = vpop.permute.xlu0 %1053
    %v1058 = vsub.f32 %v825, %v1050
    %v1059 = vsub.f32 %v826, %v1052
    %v1060 = vsub.f32 %v827, %v1054
    %v1061 = vmul.f32 %v59, %v1058
    %v1062 = vmul.f32 %v60, %v1059
    %v1063 = vmul.f32 %v61, %v1060
    %1067 = vrot.lane.b32.xlu0 %v1061, 104
    %v1068 = vpop.permute.xlu0 %1067
    %1069 = vrot.lane.b32.xlu0 %v1062, 104
    %v1070 = vpop.permute.xlu0 %1069
    %1071 = vrot.lane.b32.xlu0 %v1063, 104
    %v1072 = vpop.permute.xlu0 %1071
    %v1076 = vsel %vm948, %v1068, 0.0
    %1077 = vadd.xlane.f32.xlu0 %v1076
    %v1078 = vpop.xlane.xlu0 %1077
    %v1079 = vsel %vm948, %v1070, 0.0
    %1080 = vadd.xlane.f32.xlu0 %v1079
    %v1081 = vpop.xlane.xlu0 %1080
    %v1082 = vsel %vm948, %v1072, 0.0
    %1083 = vadd.xlane.f32.xlu0 %v1082
    %v1084 = vpop.xlane.xlu0 %1083
    %v1085 = vadd.f32 %v967, %v1006
    %v1086 = vadd.f32 %v970, %v1009
    %v1087 = vadd.f32 %v973, %v1012
    %v1088 = vadd.f32 %v1085, %v1042
    %v1089 = vadd.f32 %v1086, %v1045
    %v1090 = vadd.f32 %v1087, %v1048
    %v1091 = vadd.f32 %v1088, %v1078
    %v1092 = vadd.f32 %v1089, %v1081
    %v1093 = vadd.f32 %v1090, %v1084
    %1097 = vrot.lane.b32.xlu0 %v956, 10
    %v1098 = vpop.permute.xlu0 %1097
    %1099 = vrot.lane.b32.xlu0 %v957, 10
    %v1100 = vpop.permute.xlu0 %1099
    %1101 = vrot.lane.b32.xlu0 %v958, 10
    %v1102 = vpop.permute.xlu0 %1101
    %vm1106 = vcmask 80896
    %v1107 = vsel %vm1106, %v355, %v1098
    %v1108 = vsel %vm1106, %v360, %v1100
    %v1109 = vsel %vm1106, %v365, %v1102
    %vm1110 = vcmask 343040
    %v1111 = vsel %vm1110, %v1107, %v1091
    %v1112 = vsel %vm1110, %v1108, %v1092
    %v1113 = vsel %vm1110, %v1109, %v1093
    %vm1114 = vcmask 351232
    %1115 = vst.msk [vmem:[#allocation7] sm:$0xff] %vm1114, %v1111
    %1116 = vst.msk [vmem:[#allocation7 + $0x8] sm:$0xff] %vm1114, %v1112
    %1117 = vst.msk [vmem:[#allocation7 + $0x10] sm:$0xff] %vm1114, %v1113
    // Predicated region
    $region42: #{tpu_custom_call.1} parent=1 // pred_check
      _
    $region43: #{tpu_custom_call.1} parent=1 // pred_check_branch
      %1119 = sbr.rel (0) target = $region45
    $region44: #{tpu_custom_call.1} parent=1 // pred_region
      %s1121 = ssub.s32 384, 384
      %1122 = vsyncadd [#allocation4], %s1121
      %s1123 = sshll.u32 [#allocation7], 4
      %s1124 = int_to_ptr.vmem [resolvable:$true] %s1123
      %1129 = dma.vmem_to_hbm [thread:$0]  %s1124, 384, %s8, [#allocation4], 128, 128, 8
    $region45: #{tpu_custom_call.1} parent=1 // pred_fallthru
      _
    // Predicated region
    $region46: #{tpu_custom_call.1} parent=1 // pred_check
      _
    $region47: #{tpu_custom_call.1} parent=1 // pred_check_branch
      %1131 = sbr.rel (0) target = $region49
    $region48: #{tpu_custom_call.1} parent=1 // pred_region
      %s1133 = ssub.s32 128, 128
      %1134 = vsyncadd [#allocation9], %s1133
      %s1136 = sshll.u32 [#allocation8], 4
      %s1137 = int_to_ptr.vmem [resolvable:$true] %s1136
      %1139 = dma.vmem_to_hbm [thread:$0]  %s1137, 128, %s9, [#allocation9]
    $region49: #{tpu_custom_call.1} parent=1 // pred_fallthru
      _
    // Predicated region
    $region50: #{tpu_custom_call.1} parent=1 // pred_check
      _
    $region51: #{tpu_custom_call.1} parent=1 // pred_check_branch
      %1141 = sbr.rel (0) target = $region53
    $region52: #{tpu_custom_call.1} parent=1 // pred_region
      %1142 = dma.done [#allocation4], 384
    $region53: #{tpu_custom_call.1} parent=1 // pred_fallthru
      _
    // Predicated region
    $region54: #{tpu_custom_call.1} parent=1 // pred_check
      _
    $region55: #{tpu_custom_call.1} parent=1 // pred_check_branch
      %1144 = sbr.rel (0) target = $region57
    $region56: #{tpu_custom_call.1} parent=1 // pred_region
      %1145 = dma.done [#allocation9], 128
    $region57: #{tpu_custom_call.1} parent=1 // pred_fallthru
      _
    %1146 = vsyncpa [#allocation3], 1
    %1147 = vsyncpa [#allocation6], 1
    %1148 = vsyncpa [#allocation4], 1
    %1149 = vsyncpa [#allocation9], 1

</llo_original>
